<compile_context>
chip_gen: v5e
topology: v5e:2x2
jax: 0.10.0
libtpu: 0.0.40
codegen_flags: <defaults>
</compile_context>

<pallas_src>
import functools

import jax
import jax.numpy as jnp
from jax.experimental import pallas as pl
from jax.experimental.pallas import tpu as pltpu

LANES = 128


def _ste_round_kernel(x_ref, o_ref):
    # Elementwise round-half-to-even (same semantics as torch.round) on the VPU.
    # Partial final blocks are handled by Pallas boundary masking on the store.
    o_ref[...] = jnp.round(x_ref[...])


def _cdiv(a, b):
    return -(-a // b)


def _round_up(a, m):
    return _cdiv(a, m) * m


@functools.lru_cache(maxsize=1)
def _tpu_config():
    """Return (num_tensorcores, target_block_bytes, vmem_limit_bytes), detected defensively."""
    vmem_bytes = None
    num_cores = None
    kind = ""
    try:
        info = pltpu.get_tpu_info()
        vmem_bytes = int(getattr(info, "vmem_capacity_bytes", 0)) or None
        for attr in ("num_tensorcores", "tensor_core_count"):
            v = getattr(info, attr, None)
            if v:
                num_cores = int(v)
                break
    except Exception:
        pass
    try:
        kind = str(getattr(jax.devices()[0], "device_kind", "") or "").lower()
    except Exception:
        pass
    if num_cores is None:
        # v7x is the only generation with 2 TensorCores per chip; it also has 64 MiB VMEM.
        small_vmem = vmem_bytes is not None and vmem_bytes <= (96 << 20)
        num_cores = 2 if ("v7" in kind or small_vmem) else 1
    if vmem_bytes is not None and vmem_bytes >= (100 << 20):
        # v5e / v6e: 128 MiB physical VMEM -> 16 MiB blocks (2 x (in+out) = 64 MiB pipelined).
        return num_cores, 16 << 20, 96 << 20
    # v7x (64 MiB VMEM) or unknown hardware: 8 MiB blocks (32 MiB pipelined), 40 MiB scoped
    # limit -- safe on every generation.
    return num_cores, 8 << 20, 40 << 20


def _pick_block(total, max_block, align, num_cores):
    """Pick (block_len, grid_len) along one axis.

    `total`, `max_block`, `align` are in elements of the blocked axis.  Non-final blocks are
    `align`-multiples; a single full-extent block is exempt from the (8, 128) rule.  On 2-TC
    parts the step count is kept even so the "parallel" grid axis shards evenly.
    """
    max_block = max(align, (max_block // align) * align)
    if total <= max_block:
        if num_cores > 1 and total >= 2 * align:
            # Split so both v7x TensorCores get work.
            blk = _round_up(_cdiv(total, 2), align)
            return blk, _cdiv(total, blk)
        return total, 1  # single full-extent block
    g = _cdiv(total, max_block)
    if num_cores > 1 and g % 2:
        g += 1  # balance the step count across the two TensorCores
    blk = _round_up(_cdiv(total, g), align)
    grid = _cdiv(total, blk)
    if num_cores > 1 and grid > 1 and grid % 2:
        # Alignment rounding dropped a step and made the count odd again; retry once.
        blk = _round_up(_cdiv(total, grid + 1), align)
        grid = _cdiv(total, blk)
    return blk, grid


def ste_layer(x: jax.Array, *, donate_input: bool = False) -> jax.Array:
    """Pallas implementation of STELayer.forward: elementwise round of x."""
    orig_shape = x.shape
    dtype = x.dtype
    n = x.size
    if n == 0:
        return x

    itemsize = jnp.dtype(dtype).itemsize
    sub = max(8, 32 // itemsize)  # sublane multiple by dtype packing: f32->8, bf16->16, i8->32
    num_cores, target_block_bytes, vmem_limit = _tpu_config()

    x_flat = x.reshape(-1)  # metadata-only for a contiguous array

    if n % LANES == 0:
        # Fast path: lane-dense (rows, 128) slab; fully contiguous blocks -> unmasked vst.
        rows = n // LANES
        tm, steps = _pick_block(rows, target_block_bytes // (LANES * itemsize), sub, num_cores)
        operand = x_flat.reshape(rows, LANES)
        out_shape = jax.ShapeDtypeStruct((rows, LANES), dtype)
        in_spec = pl.BlockSpec((tm, LANES), lambda i: (i, 0))
        out_spec = pl.BlockSpec((tm, LANES), lambda i: (i, 0))
    else:
        # Ragged element count: zero-copy (1, n) view, blocked along the lane axis; the
        # partial final block is masked by Pallas.  Logical block bytes are 1/8 of the
        # aligned path because the single-sublane block pads 8x in VMEM under (8,128) tiling.
        blk, steps = _pick_block(n, max(LANES, (target_block_bytes // 8) // itemsize),
                                 LANES, num_cores)
        operand = x_flat.reshape(1, n)
        out_shape = jax.ShapeDtypeStruct((1, n), dtype)
        in_spec = pl.BlockSpec((1, blk), lambda i: (0, i))
        out_spec = pl.BlockSpec((1, blk), lambda i: (0, i))

    out = pl.pallas_call(
        _ste_round_kernel,
        out_shape=out_shape,
        grid_spec=pltpu.PrefetchScalarGridSpec(
            num_scalar_prefetch=0,
            grid=(steps,),
            in_specs=[in_spec],
            out_specs=out_spec,
        ),
        compiler_params=pltpu.CompilerParams(
            dimension_semantics=("parallel",),
            vmem_limit_bytes=vmem_limit,
        ),
        cost_estimate=pl.CostEstimate(
            flops=n, transcendentals=0, bytes_accessed=2 * n * itemsize),
        input_output_aliases=({0: 0} if donate_input else {}),
    )(operand)

    return out.reshape(orig_shape)


if __name__ == "__main__":
    key = jax.random.PRNGKey(0)
    k1, k2 = jax.random.split(key)

    # Aligned case: typical NCHW feature map, n % 128 == 0 -> lane-dense (rows, 128) path.
    x = jax.random.normal(k1, (2, 4, 16, 16), dtype=jnp.float32) * 2.0
    y = ste_layer(x)
    jax.block_until_ready(y)
    assert y.shape == x.shape and y.dtype == x.dtype
    assert bool(jnp.all(y == jnp.round(x)))

    # Ragged case: element count not a multiple of 128 -> zero-copy (1, n) path.
    xr = jax.random.normal(k2, (3, 5, 7), dtype=jnp.float32) * 2.0
    yr = ste_layer(xr)
    jax.block_until_ready(yr)
    assert yr.shape == xr.shape and yr.dtype == xr.dtype
    assert bool(jnp.all(yr == jnp.round(xr)))

    print("KERNEL_OK")
</pallas_src>

<mosaic_0001>
module attributes {stable_mosaic.version = 11 : i64} {
  func.func @_ste_round_kernel(%arg0: i32, %arg1: memref<16x128xf32, #tpu.memory_space<vmem>>, %arg2: memref<16x128xf32, #tpu.memory_space<vmem>>) attributes {dimension_semantics = [#tpu.dimension_semantics<parallel>], iteration_bounds = array<i64: 1>, scalar_prefetch = 0 : i64, scratch_operands = 0 : i64, tpu.core_type = #tpu.core_type<tc>, window_params = [{transform_indices = @transform_0, window_bounds = array<i64: 16, 128>}, {transform_indices = @transform_1, window_bounds = array<i64: 16, 128>}]} {
    %c0 = arith.constant 0 : index
    %c0_0 = arith.constant 0 : index
    %0 = vector.load %arg1[%c0, %c0_0] : memref<16x128xf32, #tpu.memory_space<vmem>>, vector<16x128xf32>
    %1 = math.roundeven %0 : vector<16x128xf32>
    %c0_1 = arith.constant 0 : index
    %c0_2 = arith.constant 0 : index
    %2 = vector.load %arg2[%c0_1, %c0_2] : memref<16x128xf32, #tpu.memory_space<vmem>>, vector<16x128xf32>
    tpu.vector_store %arg2[%c0_1, %c0_2], %1 {strides = array<i32>} : memref<16x128xf32, #tpu.memory_space<vmem>>, vector<16x128xf32>,
    return
  }
  func.func @transform_0(%arg0: i32) -> (i32, i32) {
    %c0_i32 = arith.constant 0 : i32
    %c0_i32_0 = arith.constant 0 : i32
    return %arg0, %c0_i32 : i32, i32
  }
  func.func @transform_1(%arg0: i32) -> (i32, i32) {
    %c0_i32 = arith.constant 0 : i32
    %c0_i32_0 = arith.constant 0 : i32
    return %arg0, %c0_i32 : i32, i32
  }
}

</mosaic_0001>

<llo_original>
// kernel: tpu_custom_call.1
$region0: #{tpu_custom_call.1}
  #allocation0 [shape = 'u32[]', space=smem, size = 0x4, offset = 0x4, fixed_abs, tag = 'smem constant byte address 0x4 - core index']
  #allocation1 [shape = 'u32[72,128]{1,0:T(1,128)}', space=vmem, size = 0x9000, scoped, tag = 'internal scratch']
  %s0 = inlined_call_operand.hbm [shape: f32[16,128], index: 0, kind: input, shape index: {}]
  %s1 = inlined_call_operand.hbm [shape: f32[16,128], index: 1, kind: output, shape index: {}]
  %s2 = sld [smem:[#allocation0]]
  $region18: #{tpu_custom_call.1} parent=0
    _
  %s4 = ssub.s32 1, %s2
  %s5 = scalar_select 0, %s4, %s2
  $region1: #{tpu_custom_call.1} parent=0
    #allocation2 [shape = 'u8[8192]{0}', space=vmem, size = 0x2000, scoped, tag = 'input window, operand 0, single buffered']
    #allocation3 [shape = 's32[1]{0}', space=sflag, size = 0x4, scoped, tag = 'scoped memory for tpu_custom_call.1']
    #allocation4 [shape = 's32[1]{0}', space=sflag, size = 0x4, scoped, tag = 'scoped memory for tpu_custom_call.1']
    #allocation5 [shape = 'u8[8192]{0}', space=vmem, size = 0x2000, scoped, tag = 'output window, operand 0, single buffered']
    %6 = vsyncpa [#allocation3], 0
    %7 = vsyncpa [#allocation4], 0
    // Predicated region
    $region2: #{tpu_custom_call.1} parent=1 // pred_check
      _
    $region3: #{tpu_custom_call.1} parent=1 // pred_check_branch
      %9 = sbr.rel (0) target = $region5
    $region4: #{tpu_custom_call.1} parent=1 // pred_region
      %11 = vsyncadd [#allocation3], 0
      %s12 = sshll.u32 %s0, 4
      %s13 = int_to_ptr.hbm [resolvable:$true] %s12
      %s14 = sshll.u32 [#allocation2], 4
      %s15 = int_to_ptr.vmem [resolvable:$true] %s14
      %20 = dma.hbm_to_vmem [thread:$0]  %s13, 256, %s15, [#allocation3], 128, 128, 8
    $region5: #{tpu_custom_call.1} parent=1 // pred_fallthru
      _
    // Predicated region
    $region6: #{tpu_custom_call.1} parent=1 // pred_check
      _
    $region7: #{tpu_custom_call.1} parent=1 // pred_check_branch
      %22 = sbr.rel (0) target = $region9
    $region8: #{tpu_custom_call.1} parent=1 // pred_region
      %24 = dma.done [#allocation3], 256
    $region9: #{tpu_custom_call.1} parent=1 // pred_fallthru
      _
    %v25 = vld [vmem:[#allocation2] sm:$0xff]
    %v26 = vld [vmem:[#allocation2 + $0x8] sm:$0xff]
    %v27 = vround.ne.pseudo %v25
    %v28 = vround.ne.pseudo %v26
    %29 = vst [vmem:[#allocation5] sm:$0xff] %v27
    %30 = vst [vmem:[#allocation5 + $0x8] sm:$0xff] %v28
    // Predicated region
    $region10: #{tpu_custom_call.1} parent=1 // pred_check
      _
    $region11: #{tpu_custom_call.1} parent=1 // pred_check_branch
      %32 = sbr.rel (0) target = $region13
    $region12: #{tpu_custom_call.1} parent=1 // pred_region
      %34 = vsyncadd [#allocation4], 0
      %s35 = sshll.u32 [#allocation5], 4
      %s36 = int_to_ptr.vmem [resolvable:$true] %s35
      %s37 = sshll.u32 %s1, 4
      %s38 = int_to_ptr.hbm [resolvable:$true] %s37
      %43 = dma.vmem_to_hbm [thread:$0]  %s36, 256, %s38, [#allocation4], 128, 128, 8
    $region13: #{tpu_custom_call.1} parent=1 // pred_fallthru
      _
    // Predicated region
    $region14: #{tpu_custom_call.1} parent=1 // pred_check
      _
    $region15: #{tpu_custom_call.1} parent=1 // pred_check_branch
      %45 = sbr.rel (0) target = $region17
    $region16: #{tpu_custom_call.1} parent=1 // pred_region
      %47 = dma.done [#allocation4], 256
    $region17: #{tpu_custom_call.1} parent=1 // pred_fallthru
      _
    %48 = vsyncpa [#allocation3], 1
    %49 = vsyncpa [#allocation4], 1

</llo_original>
